<compile_context>
chip_gen: v6e
topology: v6e:2x2x1
jax: 0.10.0
libtpu: 0.0.40
codegen_flags: <defaults>
</compile_context>

<pallas_src>
import jax
import jax.numpy as jnp
from jax import lax
from jax.experimental import pallas as pl
from jax.experimental.pallas import tpu as pltpu


# ----------------------------- sizing helpers ---------------------------------

def _round_up(n, m):
    return ((n + m - 1) // m) * m


def _vmem_capacity_bytes():
    try:
        return int(pltpu.get_tpu_info().vmem_capacity_bytes)
    except Exception:
        return 64 * 1024 * 1024          # conservative default (v7x per-core)


def _vmem_limit(block_bytes, cap):
    # Generous headroom over the estimated resident blocks, capped below
    # physical VMEM for the current generation.
    return int(min(cap * 9 // 10, max(3 * block_bytes, 32 * 1024 * 1024)))


def _pad_points(p):
    # Lane-dense point axis; multiples of 256 for larger P so the sampling
    # matmul's N dim fills the 2x256x256 MXUs on v6e/v7x.
    return 128 if p <= 128 else _round_up(p, 256)


def _choose_hw_tile(hw, n_cols, cap):
    """Lane (HW) tile for the downhead kernel, sized from a VMEM budget."""
    budget = cap // 4
    per_col = 4 * 2 * n_cols                       # f32, double-buffered
    t_max = max(128, min(8192, (budget // per_col) // 128 * 128))
    if t_max >= hw:
        return _round_up(hw, 128)
    n_steps = -(-hw // t_max)
    return _round_up(-(-hw // n_steps), 128)       # minimize padding overhead


def _choose_h_tile(h, w, cf, p_pad, cap):
    """Sublane (H) tile for the separable sampling kernel."""
    budget = cap // 4
    per_row = 4 * 2 * (cf * w + p_pad)             # feat rows + wyT rows, x2
    t_max = max(8, (budget // per_row) // 8 * 8)
    if t_max >= h:
        return h
    n_steps = -(-h // t_max)
    return _round_up(-(-h // n_steps), 8)


# ------------------------------ Pallas kernels --------------------------------

_NT = (((1,), (1,)), ((), ()))   # contract last dims of both operands (A @ B.T)


def _downhead_kernel(x_ref, wd_ref, bd_ref, wz_ref, bz_ref,
                     dp_ref, z_ref, gap_ref):
    # x: [1, Cin, tHW]; wd: [C, Cin]; bd: [C, 1]; wz: [Cout, Cin]; bz: [Cout, 1]
    # outputs: dp [1,C,tHW] coarse logits, z [1,Cout,tHW] head-projected
    # features, gap [1,1,tHW] = (top1 - top2) of the coarse logits.
    xt = x_ref[0]
    dp = jnp.dot(wd_ref[...], xt, preferred_element_type=jnp.float32) + bd_ref[...]
    dp_ref[0] = dp
    z_ref[0] = (jnp.dot(wz_ref[...], xt, preferred_element_type=jnp.float32)
                + bz_ref[...])
    # Running top-2 over class rows (VPU max/min, exact under ties).  The tiny
    # C/Cin matmuls above are MXU-starved, but this kernel is HBM/store bound,
    # so memory (not the MXU) is the binding unit.
    c = dp.shape[0]
    m1 = dp[0:1, :]
    m2 = jnp.full_like(m1, -jnp.inf)
    for i in range(1, c):
        v = dp[i:i + 1, :]
        m2 = jnp.maximum(m2, jnp.minimum(m1, v))
        m1 = jnp.maximum(m1, v)
    gap_ref[0] = m1 - m2


def _point_sample_kernel(feat_ref, wx_ref, wy_ref, b_ref, o_ref):
    # feat: [1,Cf,tH,W]; wx: [1,P,W]; wy: [1,tH,P]; b: [Cf,1]; o: [1,Cf,P].
    # Accumulates directly into the resident output block across the H-tile
    # reduction axis; per-channel bias is added at the final step.
    k = pl.program_id(1)

    @pl.when(k == 0)
    def _():
        o_ref[...] = jnp.zeros_like(o_ref)

    feat = feat_ref[0]                                    # [Cf, tH, W]
    cf, th, w = feat.shape
    p = wx_ref.shape[1]
    # stage 1 (MXU): contract W against the 2-tap horizontal weights.
    a = lax.dot_general(feat.reshape(cf * th, w), wx_ref[0], _NT,
                        preferred_element_type=jnp.float32)        # [Cf*tH, P]
    # stage 2 (VPU/XLU): weight by the 2-tap vertical weights, reduce over H.
    a = a.reshape(cf, th, p) * wy_ref[0][None, :, :]
    o_ref[0] += jnp.sum(a, axis=1)

    @pl.when(k == pl.num_programs(1) - 1)
    def _():
        o_ref[0] += b_ref[...]


# ------------------------------ kernel wrappers --------------------------------

def fused_downhead(x_flat, wd, bd, wz, bz):
    """down_pred / Z / top-2 gap in ONE pass over x.

    x_flat: [B, Cin, HW]; wd: [C, Cin]; bd: [C, 1]; wz: [Cout, Cin]; bz: [Cout, 1].
    Returns (down_pred [B,C,HW], Z [B,Cout,HW], gap [B,1,HW]).
    """
    B, Cin, HW = x_flat.shape
    C, Cout = wd.shape[0], wz.shape[0]
    cap = _vmem_capacity_bytes()
    t_hw = _choose_hw_tile(HW, Cin + C + Cout + 1, cap)
    hw_pad = _round_up(HW, t_hw)
    if hw_pad > HW:
        x_flat = jnp.pad(x_flat, ((0, 0), (0, 0), (0, hw_pad - HW)))
    blk = 4 * 2 * ((Cin + C + Cout + 1) * t_hw + (C + Cout) * (Cin + 1))
    grid = (B, hw_pad // t_hw)
    dp, z, gap = pl.pallas_call(
        _downhead_kernel,
        out_shape=(jax.ShapeDtypeStruct((B, C, hw_pad), jnp.float32),
                   jax.ShapeDtypeStruct((B, Cout, hw_pad), jnp.float32),
                   jax.ShapeDtypeStruct((B, 1, hw_pad), jnp.float32)),
        grid=grid,
        in_specs=[
            pl.BlockSpec((1, Cin, t_hw), lambda b, k: (b, 0, k)),
            pl.BlockSpec((C, Cin), lambda b, k: (0, 0)),
            pl.BlockSpec((C, 1), lambda b, k: (0, 0)),
            pl.BlockSpec((Cout, Cin), lambda b, k: (0, 0)),
            pl.BlockSpec((Cout, 1), lambda b, k: (0, 0)),
        ],
        out_specs=[
            pl.BlockSpec((1, C, t_hw), lambda b, k: (b, 0, k)),
            pl.BlockSpec((1, Cout, t_hw), lambda b, k: (b, 0, k)),
            pl.BlockSpec((1, 1, t_hw), lambda b, k: (b, 0, k)),
        ],
        compiler_params=pltpu.CompilerParams(
            dimension_semantics=("parallel", "parallel"),
            vmem_limit_bytes=_vmem_limit(blk, cap)),
        cost_estimate=pl.CostEstimate(
            flops=2 * B * (C + Cout) * Cin * hw_pad,
            transcendentals=0,
            bytes_accessed=4 * B * hw_pad * (Cin + C + Cout + 1)),
    )(x_flat, wd, bd, wz, bz)
    return dp[:, :, :HW], z[:, :, :HW], gap[:, :, :HW]


def _bilinear_tap_weights(points, H, W, *, p_pad, h_rows):
    """Separable 2-tap weights reproducing F.grid_sample(feat, 2*points-1,
    mode='bilinear', padding_mode='zeros', align_corners=False):

        sampled[b,c,p] = sum_h sum_w feat[b,c,h,w] * wyT[b,h,p] * wx[b,p,w]

    Out-of-range taps get zero weight (== zeros padding); padded point columns
    are all-zero.  wx: [B, p_pad, W] f32;  wyT: [B, h_rows, p_pad] f32.
    """
    B, P, _ = points.shape
    ix = points[..., 0] * W - 0.5
    iy = points[..., 1] * H - 0.5
    x0 = jnp.floor(ix)
    y0 = jnp.floor(iy)
    fx = ix - x0
    fy = iy - y0

    def taps(i0f, frac, size):
        i0 = i0f.astype(jnp.int32)
        i1 = i0 + 1
        w0 = jnp.where((i0 >= 0) & (i0 < size), 1.0 - frac, 0.0)
        w1 = jnp.where((i1 >= 0) & (i1 < size), frac, 0.0)
        return i0, w0, i1, w1

    xi0, xw0, xi1, xw1 = taps(x0, fx, W)
    cols = jnp.arange(W, dtype=jnp.int32)
    wx = (xw0[..., None] * (xi0[..., None] == cols).astype(jnp.float32)
          + xw1[..., None] * (xi1[..., None] == cols).astype(jnp.float32))

    yi0, yw0, yi1, yw1 = taps(y0, fy, H)
    rows = jnp.arange(h_rows, dtype=jnp.int32)
    wyT = (yw0[:, None, :] * (yi0[:, None, :] == rows[None, :, None]).astype(jnp.float32)
           + yw1[:, None, :] * (yi1[:, None, :] == rows[None, :, None]).astype(jnp.float32))

    if p_pad > P:
        wx = jnp.pad(wx, ((0, 0), (0, p_pad - P), (0, 0)))
        wyT = jnp.pad(wyT, ((0, 0), (0, 0), (0, p_pad - P)))
    return wx, wyT


def point_sample(feat, points, bias=None):
    """Pallas bilinear point sampling (== PyTorch point_sample: grid_sample,
    bilinear, zeros padding, align_corners=False).

    feat: [B, Cf, H, W]; points: [B, P, 2] in [0,1] ((...,0)=x width, (...,1)=y).
    Returns [B, Cf, P] (+ per-channel bias if given).
    """
    B, Cf, H, W = feat.shape
    P = points.shape[1]
    p_pad = _pad_points(P)
    cap = _vmem_capacity_bytes()
    t_h = _choose_h_tile(H, W, Cf, p_pad, cap)
    h_pad = _round_up(H, t_h)
    wx, wyT = _bilinear_tap_weights(points, H, W, p_pad=p_pad, h_rows=h_pad)
    feat = feat.astype(jnp.float32)
    if h_pad > H:
        feat = jnp.pad(feat, ((0, 0), (0, 0), (0, h_pad - H), (0, 0)))
    if bias is None:
        bias_arr = jnp.zeros((Cf, 1), jnp.float32)
    else:
        bias_arr = jnp.asarray(bias, jnp.float32).reshape(Cf, 1)
    blk = 4 * 2 * (Cf * t_h * W + p_pad * W + t_h * p_pad + Cf * p_pad + Cf)
    grid = (B, h_pad // t_h)
    out = pl.pallas_call(
        _point_sample_kernel,
        out_shape=jax.ShapeDtypeStruct((B, Cf, p_pad), jnp.float32),
        grid=grid,
        in_specs=[
            pl.BlockSpec((1, Cf, t_h, W), lambda b, k: (b, 0, k, 0)),
            pl.BlockSpec((1, p_pad, W), lambda b, k: (b, 0, 0)),
            pl.BlockSpec((1, t_h, p_pad), lambda b, k: (b, k, 0)),
            pl.BlockSpec((Cf, 1), lambda b, k: (0, 0)),
        ],
        out_specs=pl.BlockSpec((1, Cf, p_pad), lambda b, k: (b, 0, 0)),
        compiler_params=pltpu.CompilerParams(
            dimension_semantics=("parallel", "arbitrary"),
            vmem_limit_bytes=_vmem_limit(blk, cap)),
        cost_estimate=pl.CostEstimate(
            flops=2 * B * Cf * h_pad * W * p_pad + 2 * B * Cf * h_pad * p_pad,
            transcendentals=0,
            bytes_accessed=4 * B * (Cf * h_pad * W + p_pad * W
                                    + h_pad * p_pad + Cf * p_pad)),
    )(feat, wx, wyT, bias_arr)
    return out[:, :, :P]


# -------------------------------- JAX glue ------------------------------------

def sampling_points_train(gap_map, n_sample, k, beta, key):
    """training=True branch of sampling_points, driven by the fused gap map.

    gap_map: [B, 1, H, W] = (top1 - top2) of the coarse logits.  The PyTorch
    reference sorts per-pixel and THEN samples, and sampling is linear, so
    interpolating the per-pixel gap map is exactly its uncertainty (negated).
    Returns points [B, n_sample, 2].
    """
    B = gap_map.shape[0]
    n_importance = int(beta * n_sample)
    k_over = k * n_sample
    key_over, key_cov = jax.random.split(key)
    over_gen = jax.random.uniform(key_over, (B, k_over, 2), jnp.float32)
    sampled_gap = point_sample(gap_map, over_gen)[:, 0, :]          # [B, k_over]
    uncertainty = -sampled_gap
    _, idx = lax.top_k(uncertainty, n_importance)
    importance = jnp.take_along_axis(over_gen, idx[..., None], axis=1)
    coverage = jax.random.uniform(key_cov, (B, n_sample - n_importance, 2),
                                  jnp.float32)
    return jnp.concatenate([importance, coverage], axis=1)


def render_head_forward(x, params, *, num_classes, up_ratio, over_sampling_rate,
                        ratio_importance, key):
    """Forward pass of Render_head (mode='train')."""
    B, Cin, H, W = x.shape
    HW = H * W
    x_flat = x.reshape(B, Cin, HW)           # NCHW -> [B, Cin, HW], no transpose

    C = num_classes
    head_w = params['head_w']                # [Cout, C + Cin]
    Cout = head_w.shape[0]
    hw1 = head_w[:, :C]                      # acts on coarse_pred_feature
    hw2 = head_w[:, C:]                      # acts on sampled backbone features
    dwT = params['down_w'].T                 # [C, Cin]
    dbc = params['down_b'].reshape(C, 1)     # [C, 1]
    # Fold the sample_head into the downhead matmul (exact algebra):
    #   Z = hw1 @ down_pred + hw2 @ x = (hw1@Wd^T + hw2) @ x + hw1 @ bd
    wz = hw1 @ dwT + hw2                     # [Cout, Cin]
    bz = hw1 @ dbc                           # [Cout, 1]

    dp_flat, z_flat, gap_flat = fused_downhead(x_flat, dwT, dbc, wz, bz)
    down_pred = dp_flat.reshape(B, C, H, W)
    z_map = z_flat.reshape(B, Cout, H, W)
    gap_map = gap_flat.reshape(B, 1, H, W)

    # train_forward
    n_sample = H * up_ratio
    points = sampling_points_train(gap_map, n_sample, over_sampling_rate,
                                   ratio_importance, key)
    fine_pred = point_sample(z_map, points, bias=params['head_b'])
    return {'coarse_pred': down_pred, 'fine_pred': fine_pred, 'coordi': points}


# ---------------------------- reference (test only) ----------------------------

def _ref_dense_bilinear_weights(points, H, W):
    """Dense grid_sample weights (pure JAX) used only for the __main__ check."""
    B, P, _ = points.shape
    hw = H * W
    ix = points[..., 0] * W - 0.5
    iy = points[..., 1] * H - 0.5
    x0 = jnp.floor(ix)
    y0 = jnp.floor(iy)
    wx1 = ix - x0
    wy1 = iy - y0
    iota = jnp.arange(hw, dtype=jnp.int32)
    out = jnp.zeros((B, P, hw), jnp.float32)
    for cx, cy, w in [(x0,     y0,     (1 - wx1) * (1 - wy1)),
                      (x0 + 1, y0,     wx1 * (1 - wy1)),
                      (x0,     y0 + 1, (1 - wx1) * wy1),
                      (x0 + 1, y0 + 1, wx1 * wy1)]:
        xi = cx.astype(jnp.int32)
        yi = cy.astype(jnp.int32)
        valid = (xi >= 0) & (xi < W) & (yi >= 0) & (yi < H)
        flat = jnp.clip(yi, 0, H - 1) * W + jnp.clip(xi, 0, W - 1)
        w_eff = jnp.where(valid, w, 0.0)
        out = out + w_eff[..., None] * (flat[..., None] == iota).astype(jnp.float32)
    return out


# ---------------------------------- main ---------------------------------------

if __name__ == "__main__":
    key = jax.random.PRNGKey(0)
    k_x, k_dw, k_db, k_hw, k_hb, k_samp = jax.random.split(key, 6)

    B, Cin, H, W = 2, 4, 16, 16
    num_classes = 3
    up_ratio = 2
    over_sampling_rate = 3
    ratio_importance = 0.75

    x = jax.random.normal(k_x, (B, Cin, H, W), jnp.float32)
    params = {
        'down_w': jax.random.normal(k_dw, (Cin, num_classes), jnp.float32)
                  / jnp.sqrt(Cin),
        'down_b': jax.random.normal(k_db, (1, num_classes), jnp.float32) * 0.01,
        'head_w': jax.random.normal(k_hw, (num_classes, num_classes + Cin),
                                    jnp.float32) / jnp.sqrt(num_classes + Cin),
        'head_b': jax.random.normal(k_hb, (num_classes,), jnp.float32) * 0.01,
    }

    out = render_head_forward(x, params, num_classes=num_classes,
                              up_ratio=up_ratio,
                              over_sampling_rate=over_sampling_rate,
                              ratio_importance=ratio_importance, key=k_samp)
    jax.block_until_ready(out)

    # shape checks (PyTorch semantics)
    n_sample = H * up_ratio
    assert out['coarse_pred'].shape == (B, num_classes, H, W)
    assert out['fine_pred'].shape == (B, num_classes, n_sample)
    assert out['coordi'].shape == (B, n_sample, 2)

    # pure-JAX reference check (reuses the points produced by the run)
    HW = H * W
    down_ref = (jnp.einsum('bchw,cd->bdhw', x, params['down_w'])
                + params['down_b'].reshape(1, num_classes, 1, 1))
    w_ref = _ref_dense_bilinear_weights(out['coordi'], H, W)
    coarse_s = jnp.einsum('bcn,bpn->bcp',
                          down_ref.reshape(B, num_classes, HW), w_ref)
    feat_s = jnp.einsum('bcn,bpn->bcp', x.reshape(B, Cin, HW), w_ref)
    rep = jnp.concatenate([coarse_s, feat_s], axis=1)
    fine_ref = (jnp.einsum('oc,bcp->bop', params['head_w'], rep)
                + params['head_b'][None, :, None])
    assert jnp.allclose(out['coarse_pred'], down_ref, atol=1e-4, rtol=1e-4)
    assert jnp.allclose(out['fine_pred'], fine_ref, atol=1e-4, rtol=1e-4)

    print("KERNEL_OK")
</pallas_src>

<mosaic_0001>
module attributes {stable_mosaic.version = 11 : i64} {
  func.func @_downhead_kernel(%arg0: i32, %arg1: i32, %arg2: memref<1x4x256xf32, #tpu.memory_space<vmem>>, %arg3: memref<3x4xf32, #tpu.memory_space<vmem>>, %arg4: memref<3x1xf32, #tpu.memory_space<vmem>>, %arg5: memref<3x4xf32, #tpu.memory_space<vmem>>, %arg6: memref<3x1xf32, #tpu.memory_space<vmem>>, %arg7: memref<1x3x256xf32, #tpu.memory_space<vmem>>, %arg8: memref<1x3x256xf32, #tpu.memory_space<vmem>>, %arg9: memref<1x1x256xf32, #tpu.memory_space<vmem>>) attributes {dimension_semantics = [#tpu.dimension_semantics<parallel>, #tpu.dimension_semantics<parallel>], iteration_bounds = array<i64: 2, 1>, scalar_prefetch = 0 : i64, scratch_operands = 0 : i64, tpu.core_type = #tpu.core_type<tc>, window_params = [{transform_indices = @transform_0, window_bounds = array<i64: 1, 4, 256>}, {pipeline_mode = #tpu.pipeline_mode<synchronous>, transform_indices = @transform_1, window_bounds = array<i64: 3, 4>}, {pipeline_mode = #tpu.pipeline_mode<synchronous>, transform_indices = @transform_2, window_bounds = array<i64: 3, 1>}, {pipeline_mode = #tpu.pipeline_mode<synchronous>, transform_indices = @transform_3, window_bounds = array<i64: 3, 4>}, {pipeline_mode = #tpu.pipeline_mode<synchronous>, transform_indices = @transform_4, window_bounds = array<i64: 3, 1>}, {transform_indices = @transform_5, window_bounds = array<i64: 1, 3, 256>}, {transform_indices = @transform_6, window_bounds = array<i64: 1, 3, 256>}, {transform_indices = @transform_7, window_bounds = array<i64: 1, 1, 256>}]} {
    %c0 = arith.constant 0 : index
    %c0_0 = arith.constant 0 : index
    %c0_1 = arith.constant 0 : index
    %0 = vector.load %arg2[%c0, %c0_0, %c0_1] : memref<1x4x256xf32, #tpu.memory_space<vmem>>, vector<1x4x256xf32>
    %1 = vector.shape_cast %0 : vector<1x4x256xf32> to vector<4x256xf32>
    %c0_2 = arith.constant 0 : index
    %c0_3 = arith.constant 0 : index
    %2 = vector.load %arg3[%c0_2, %c0_3] : memref<3x4xf32, #tpu.memory_space<vmem>>, vector<3x4xf32>
    %cst = arith.constant dense<0.000000e+00> : vector<3x256xf32>
    %3 = tpu.matmul %2, %1, %cst {dimension_numbers = #tpu.dot_dimension_numbers<[1], [0], [0], [1], [0, 0, 1, 1], [], []>} : vector<3x4xf32>, vector<4x256xf32>, vector<3x256xf32> -> vector<3x256xf32>
    %c0_4 = arith.constant 0 : index
    %c0_5 = arith.constant 0 : index
    %4 = vector.load %arg4[%c0_4, %c0_5] : memref<3x1xf32, #tpu.memory_space<vmem>>, vector<3x1xf32>
    %5 = vector.broadcast %4 : vector<3x1xf32> to vector<3x256xf32>
    %6 = arith.addf %3, %5 : vector<3x256xf32>
    %c0_6 = arith.constant 0 : index
    %c0_7 = arith.constant 0 : index
    %c0_8 = arith.constant 0 : index
    %7 = vector.load %arg7[%c0_6, %c0_7, %c0_8] : memref<1x3x256xf32, #tpu.memory_space<vmem>>, vector<1x3x256xf32>
    %8 = vector.shape_cast %7 : vector<1x3x256xf32> to vector<3x256xf32>
    %9 = vector.shape_cast %6 : vector<3x256xf32> to vector<1x3x256xf32>
    tpu.vector_store %arg7[%c0_6, %c0_7, %c0_8], %9 {strides = array<i32>} : memref<1x3x256xf32, #tpu.memory_space<vmem>>, vector<1x3x256xf32>,
    %c0_9 = arith.constant 0 : index
    %c0_10 = arith.constant 0 : index
    %10 = vector.load %arg5[%c0_9, %c0_10] : memref<3x4xf32, #tpu.memory_space<vmem>>, vector<3x4xf32>
    %cst_11 = arith.constant dense<0.000000e+00> : vector<3x256xf32>
    %11 = tpu.matmul %10, %1, %cst_11 {dimension_numbers = #tpu.dot_dimension_numbers<[1], [0], [0], [1], [0, 0, 1, 1], [], []>} : vector<3x4xf32>, vector<4x256xf32>, vector<3x256xf32> -> vector<3x256xf32>
    %c0_12 = arith.constant 0 : index
    %c0_13 = arith.constant 0 : index
    %12 = vector.load %arg6[%c0_12, %c0_13] : memref<3x1xf32, #tpu.memory_space<vmem>>, vector<3x1xf32>
    %13 = vector.broadcast %12 : vector<3x1xf32> to vector<3x256xf32>
    %14 = arith.addf %11, %13 : vector<3x256xf32>
    %c0_14 = arith.constant 0 : index
    %c0_15 = arith.constant 0 : index
    %c0_16 = arith.constant 0 : index
    %15 = vector.load %arg8[%c0_14, %c0_15, %c0_16] : memref<1x3x256xf32, #tpu.memory_space<vmem>>, vector<1x3x256xf32>
    %16 = vector.shape_cast %15 : vector<1x3x256xf32> to vector<3x256xf32>
    %17 = vector.shape_cast %14 : vector<3x256xf32> to vector<1x3x256xf32>
    tpu.vector_store %arg8[%c0_14, %c0_15, %c0_16], %17 {strides = array<i32>} : memref<1x3x256xf32, #tpu.memory_space<vmem>>, vector<1x3x256xf32>,
    %18 = vector.extract_strided_slice %6 {offsets = [0, 0], sizes = [1, 256], strides = [1, 1]} : vector<3x256xf32> to vector<1x256xf32>
    %cst_17 = arith.constant 0xFF800000 : f32
    %19 = vector.broadcast %cst_17 : f32 to vector<1x256xf32>
    %20 = vector.extract_strided_slice %6 {offsets = [1, 0], sizes = [1, 256], strides = [1, 1]} : vector<3x256xf32> to vector<1x256xf32>
    %21 = arith.minimumf %18, %20 : vector<1x256xf32>
    %22 = arith.maximumf %19, %21 : vector<1x256xf32>
    %23 = arith.maximumf %18, %20 : vector<1x256xf32>
    %24 = vector.extract_strided_slice %6 {offsets = [2, 0], sizes = [1, 256], strides = [1, 1]} : vector<3x256xf32> to vector<1x256xf32>
    %25 = arith.minimumf %23, %24 : vector<1x256xf32>
    %26 = arith.maximumf %22, %25 : vector<1x256xf32>
    %27 = arith.maximumf %23, %24 : vector<1x256xf32>
    %28 = arith.subf %27, %26 : vector<1x256xf32>
    %c0_18 = arith.constant 0 : index
    %c0_19 = arith.constant 0 : index
    %c0_20 = arith.constant 0 : index
    %29 = vector.load %arg9[%c0_18, %c0_19, %c0_20] : memref<1x1x256xf32, #tpu.memory_space<vmem>>, vector<1x1x256xf32>
    %30 = vector.shape_cast %29 : vector<1x1x256xf32> to vector<1x256xf32>
    %31 = vector.shape_cast %28 : vector<1x256xf32> to vector<1x1x256xf32>
    tpu.vector_store %arg9[%c0_18, %c0_19, %c0_20], %31 {strides = array<i32>} : memref<1x1x256xf32, #tpu.memory_space<vmem>>, vector<1x1x256xf32>,
    return
  }
  func.func @transform_0(%arg0: i32, %arg1: i32) -> (i32, i32, i32) {
    %c0_i32 = arith.constant 0 : i32
    %c0_i32_0 = arith.constant 0 : i32
    return %arg0, %c0_i32, %arg1 : i32, i32, i32
  }
  func.func @transform_1(%arg0: i32, %arg1: i32) -> (i32, i32) {
    %c0_i32 = arith.constant 0 : i32
    %c0_i32_0 = arith.constant 0 : i32
    %c0_i32_1 = arith.constant 0 : i32
    return %c0_i32, %c0_i32_0 : i32, i32
  }
  func.func @transform_2(%arg0: i32, %arg1: i32) -> (i32, i32) {
    %c0_i32 = arith.constant 0 : i32
    %c0_i32_0 = arith.constant 0 : i32
    %c0_i32_1 = arith.constant 0 : i32
    return %c0_i32, %c0_i32_0 : i32, i32
  }
  func.func @transform_3(%arg0: i32, %arg1: i32) -> (i32, i32) {
    %c0_i32 = arith.constant 0 : i32
    %c0_i32_0 = arith.constant 0 : i32
    %c0_i32_1 = arith.constant 0 : i32
    return %c0_i32, %c0_i32_0 : i32, i32
  }
  func.func @transform_4(%arg0: i32, %arg1: i32) -> (i32, i32) {
    %c0_i32 = arith.constant 0 : i32
    %c0_i32_0 = arith.constant 0 : i32
    %c0_i32_1 = arith.constant 0 : i32
    return %c0_i32, %c0_i32_0 : i32, i32
  }
  func.func @transform_5(%arg0: i32, %arg1: i32) -> (i32, i32, i32) {
    %c0_i32 = arith.constant 0 : i32
    %c0_i32_0 = arith.constant 0 : i32
    return %arg0, %c0_i32, %arg1 : i32, i32, i32
  }
  func.func @transform_6(%arg0: i32, %arg1: i32) -> (i32, i32, i32) {
    %c0_i32 = arith.constant 0 : i32
    %c0_i32_0 = arith.constant 0 : i32
    return %arg0, %c0_i32, %arg1 : i32, i32, i32
  }
  func.func @transform_7(%arg0: i32, %arg1: i32) -> (i32, i32, i32) {
    %c0_i32 = arith.constant 0 : i32
    %c0_i32_0 = arith.constant 0 : i32
    return %arg0, %c0_i32, %arg1 : i32, i32, i32
  }
}

</mosaic_0001>

<llo_original>
// kernel: tpu_custom_call.1
$region0: #{tpu_custom_call.1}
  #allocation0 [shape = 'u32[]', space=smem, size = 0x4, offset = 0x4, fixed_abs, tag = 'smem constant byte address 0x4 - core index']
  #allocation1 [shape = 'u32[144,128]{1,0:T(1,128)}', space=vmem, size = 0x12000, scoped, tag = 'internal scratch']
  %s0 = inlined_call_operand.hbm [shape: f32[2,4,256], index: 0, kind: input, shape index: {}]
  %s1 = inlined_call_operand.vmem [shape: f32[3,4], index: 1, kind: input, shape index: {}]
  %s2 = inlined_call_operand.vmem [shape: f32[3,1], index: 2, kind: input, shape index: {}]
  %s3 = inlined_call_operand.vmem [shape: f32[3,4], index: 3, kind: input, shape index: {}]
  %s4 = inlined_call_operand.vmem [shape: f32[3,1], index: 4, kind: input, shape index: {}]
  %s5 = inlined_call_operand.vmem [shape: f32[2,3,256], index: 5, kind: output, shape index: {0}]
  %s6 = inlined_call_operand.vmem [shape: f32[2,3,256], index: 6, kind: output, shape index: {1}]
  %s7 = inlined_call_operand.hbm [shape: f32[2,1,256], index: 7, kind: output, shape index: {2}]
  %8 = xla_tuple %s5, %s6, %s7
  %s9 = sld [smem:[#allocation0]]
  $region73: #{tpu_custom_call.1} parent=0
    _
  %s11 = ssub.s32 1, %s9
  %s12 = scalar_select 0, %s11, %s9
  $region1: #{tpu_custom_call.1} parent=0
    #allocation2 [shape = 'u8[8192]{0}', space=vmem, size = 0x2000, scoped, tag = 'input window, operand 0']
    #allocation3 [shape = 's32[2]{0}', space=sflag, size = 0x8, scoped, tag = 'scoped memory for tpu_custom_call.1']
    #allocation4 [shape = 's32[2]{0}', space=sflag, size = 0x8, scoped, tag = 'scoped memory for tpu_custom_call.1']
    #allocation5 [shape = 'u8[2048]{0}', space=vmem, size = 0x800, scoped, tag = 'output window, operand 2']
    %13 = vsyncpa [#allocation3], 0
    %s14 = scalar_lea.sflag [#allocation3], 1
    %15 = vsyncpa %s14, 0
    %16 = vsyncpa [#allocation4], 0
    %s17 = scalar_lea.sflag [#allocation4], 1
    %18 = vsyncpa %s17, 0
    loop: start=0, step=1, limit=4
    $region2: #{tpu_custom_call.1} parent=1 // loop_pre_header
      _
    $region3: #{tpu_custom_call.1} parent=1 // loop_header
      %s20 = sphi 0, %s24
      %p21 = scmp.ge.s32.totalorder %s20, 4
      %s27 = sphi 0, %s39
      %s28 = sphi 0, %s35
      %s29 = sphi 0, %s27
      %s30 = sphi 0, %s28
      %s31 = sphi 0, %s29
      %s32 = sphi 0, %s30
      %s44 = sphi 0, %s46
      %s47 = sphi 0, %s44
      %s48 = sphi 0, %s47
      %s64 = sphi 0, %s48
      %s68 = sphi 0, %s68
      %s70 = sphi 0, %s68
      %s71 = sphi 0, %s70
      %s85 = sphi 0, %s71
      %s89 = sphi 0, %s89
      %s91 = sphi 0, %s89
      %s92 = sphi 0, %s91
      %s106 = sphi 0, %s92
      %s110 = sphi 0, %s110
      %s112 = sphi 0, %s110
      %s113 = sphi 0, %s112
      %s127 = sphi 0, %s113
      %s131 = sphi 0, %s131
      %s133 = sphi 0, %s131
      %s134 = sphi 0, %s133
      %s148 = sphi 0, %s134
      %s156 = sphi 0, %s158
      %s159 = sphi 0, %s156
      %s160 = sphi 0, %s159
      %s176 = sphi 0, %s160
      %s184 = sphi 0, %s186
      %s187 = sphi 0, %s184
      %s188 = sphi 0, %s187
      %s204 = sphi 0, %s188
      %s212 = sphi 0, %s214
      %s215 = sphi 0, %s212
      %s216 = sphi 0, %s215
      %s232 = sphi 0, %s216
    $region4: #{tpu_custom_call.1} parent=1 // loop_header_branch
      %23 = sbr.rel (%p21) target = $region8
    $region5: #{tpu_custom_call.1} parent=1 // loop_body
      %s25 = ssub.s32 %s20, 1
      %s26 = ssub.s32 %s20, 2
      %s33 = sadd.s32 1, %s28
      %p34 = scmp.ge.s32.totalorder %s33, 1
      %s35 = scalar_select %p34, 0, %s33
      %s36 = sadd.s32 1, %s27
      %s37 = scalar_select %p34, %s36, %s27
      %p38 = scmp.ge.s32.totalorder %s37, 2
      %s39 = scalar_select %p38, 0, %s37
      %s40 = ssub.s32 %s27, %s39
      %s41 = ssub.s32 %s28, %s35
      %s42 = sor.u32 %s40, %s41
      %p43 = scmp.eq.s32.totalorder %s42, 0
      %s45 = sadd.s32 %s44, 1
      %s46 = scalar_select %p43, %s44, %s45
      %p49 = pneg %p43
      %p50 = scmp.eq.s32.totalorder %s20, 1
      %p51 = por %p49, %p50
      %p52 = scmp.ne.s32.totalorder %s44, %s47
      %p53 = scmp.eq.s32.totalorder %s20, 0
      %p54 = por %p52, %p53
      %p55 = scmp.ne.s32.totalorder %s44, %s47
      %p56 = scmp.eq.s32.totalorder %s25, 1
      %p57 = por %p55, %p56
      %p58 = scmp.ne.s32.totalorder %s47, %s48
      %p59 = scmp.eq.s32.totalorder %s25, 0
      %p60 = por %p58, %p59
      %p61 = scmp.ne.s32.totalorder %s47, %s48
      %p62 = scmp.eq.s32.totalorder %s26, 1
      %p63 = por %p61, %p62
      %p65 = scmp.ne.s32.totalorder %s48, %s64
      %p66 = scmp.eq.s32.totalorder %s26, 0
      %p67 = por %p65, %p66
      %s69 = sadd.s32 %s68, 1
      %p72 = scmp.eq.s32.totalorder %s20, 1
      %p73 = scmp.ne.s32.totalorder %s68, %s70
      %p74 = scmp.eq.s32.totalorder %s20, 0
      %p75 = por %p73, %p74
      %p76 = scmp.ne.s32.totalorder %s68, %s70
      %p77 = scmp.eq.s32.totalorder %s25, 1
      %p78 = por %p76, %p77
      %p79 = scmp.ne.s32.totalorder %s70, %s71
      %p80 = scmp.eq.s32.totalorder %s25, 0
      %p81 = por %p79, %p80
      %p82 = scmp.ne.s32.totalorder %s70, %s71
      %p83 = scmp.eq.s32.totalorder %s26, 1
      %p84 = por %p82, %p83
      %p86 = scmp.ne.s32.totalorder %s71, %s85
      %p87 = scmp.eq.s32.totalorder %s26, 0
      %p88 = por %p86, %p87
      %s90 = sadd.s32 %s89, 1
      %p93 = scmp.eq.s32.totalorder %s20, 1
      %p94 = scmp.ne.s32.totalorder %s89, %s91
      %p95 = scmp.eq.s32.totalorder %s20, 0
      %p96 = por %p94, %p95
      %p97 = scmp.ne.s32.totalorder %s89, %s91
      %p98 = scmp.eq.s32.totalorder %s25, 1
      %p99 = por %p97, %p98
      %p100 = scmp.ne.s32.totalorder %s91, %s92
      %p101 = scmp.eq.s32.totalorder %s25, 0
      %p102 = por %p100, %p101
      %p103 = scmp.ne.s32.totalorder %s91, %s92
      %p104 = scmp.eq.s32.totalorder %s26, 1
      %p105 = por %p103, %p104
      %p107 = scmp.ne.s32.totalorder %s92, %s106
      %p108 = scmp.eq.s32.totalorder %s26, 0
      %p109 = por %p107, %p108
      %s111 = sadd.s32 %s110, 1
      %p114 = scmp.eq.s32.totalorder %s20, 1
      %p115 = scmp.ne.s32.totalorder %s110, %s112
      %p116 = scmp.eq.s32.totalorder %s20, 0
      %p117 = por %p115, %p116
      %p118 = scmp.ne.s32.totalorder %s110, %s112
      %p119 = scmp.eq.s32.totalorder %s25, 1
      %p120 = por %p118, %p119
      %p121 = scmp.ne.s32.totalorder %s112, %s113
      %p122 = scmp.eq.s32.totalorder %s25, 0
      %p123 = por %p121, %p122
      %p124 = scmp.ne.s32.totalorder %s112, %s113
      %p125 = scmp.eq.s32.totalorder %s26, 1
      %p126 = por %p124, %p125
      %p128 = scmp.ne.s32.totalorder %s113, %s127
      %p129 = scmp.eq.s32.totalorder %s26, 0
      %p130 = por %p128, %p129
      %s132 = sadd.s32 %s131, 1
      %p135 = scmp.eq.s32.totalorder %s20, 1
      %p136 = scmp.ne.s32.totalorder %s131, %s133
      %p137 = scmp.eq.s32.totalorder %s20, 0
      %p138 = por %p136, %p137
      %p139 = scmp.ne.s32.totalorder %s131, %s133
      %p140 = scmp.eq.s32.totalorder %s25, 1
      %p141 = por %p139, %p140
      %p142 = scmp.ne.s32.totalorder %s133, %s134
      %p143 = scmp.eq.s32.totalorder %s25, 0
      %p144 = por %p142, %p143
      %p145 = scmp.ne.s32.totalorder %s133, %s134
      %p146 = scmp.eq.s32.totalorder %s26, 1
      %p147 = por %p145, %p146
      %p149 = scmp.ne.s32.totalorder %s134, %s148
      %p150 = scmp.eq.s32.totalorder %s26, 0
      %p151 = por %p149, %p150
      %s152 = ssub.s32 %s27, %s39
      %s153 = ssub.s32 %s28, %s35
      %s154 = sor.u32 %s152, %s153
      %p155 = scmp.eq.s32.totalorder %s154, 0
      %s157 = sadd.s32 %s156, 1
      %s158 = scalar_select %p155, %s156, %s157
      %p161 = pneg %p155
      %p162 = scmp.eq.s32.totalorder %s20, 1
      %p163 = por %p161, %p162
      %p164 = scmp.ne.s32.totalorder %s156, %s159
      %p165 = scmp.eq.s32.totalorder %s20, 0
      %p166 = por %p164, %p165
      %p167 = scmp.ne.s32.totalorder %s156, %s159
      %p168 = scmp.eq.s32.totalorder %s25, 1
      %p169 = por %p167, %p168
      %p170 = scmp.ne.s32.totalorder %s159, %s160
      %p171 = scmp.eq.s32.totalorder %s25, 0
      %p172 = por %p170, %p171
      %p173 = scmp.ne.s32.totalorder %s159, %s160
      %p174 = scmp.eq.s32.totalorder %s26, 1
      %p175 = por %p173, %p174
      %p177 = scmp.ne.s32.totalorder %s160, %s176
      %p178 = scmp.eq.s32.totalorder %s26, 0
      %p179 = por %p177, %p178
      %s180 = ssub.s32 %s27, %s39
      %s181 = ssub.s32 %s28, %s35
      %s182 = sor.u32 %s180, %s181
      %p183 = scmp.eq.s32.totalorder %s182, 0
      %s185 = sadd.s32 %s184, 1
      %s186 = scalar_select %p183, %s184, %s185
      %p189 = pneg %p183
      %p190 = scmp.eq.s32.totalorder %s20, 1
      %p191 = por %p189, %p190
      %p192 = scmp.ne.s32.totalorder %s184, %s187
      %p193 = scmp.eq.s32.totalorder %s20, 0
      %p194 = por %p192, %p193
      %p195 = scmp.ne.s32.totalorder %s184, %s187
      %p196 = scmp.eq.s32.totalorder %s25, 1
      %p197 = por %p195, %p196
      %p198 = scmp.ne.s32.totalorder %s187, %s188
      %p199 = scmp.eq.s32.totalorder %s25, 0
      %p200 = por %p198, %p199
      %p201 = scmp.ne.s32.totalorder %s187, %s188
      %p202 = scmp.eq.s32.totalorder %s26, 1
      %p203 = por %p201, %p202
      %p205 = scmp.ne.s32.totalorder %s188, %s204
      %p206 = scmp.eq.s32.totalorder %s26, 0
      %p207 = por %p205, %p206
      %s208 = ssub.s32 %s27, %s39
      %s209 = ssub.s32 %s28, %s35
      %s210 = sor.u32 %s208, %s209
      %p211 = scmp.eq.s32.totalorder %s210, 0
      %s213 = sadd.s32 %s212, 1
      %s214 = scalar_select %p211, %s212, %s213
      %p217 = pneg %p211
      %p218 = scmp.eq.s32.totalorder %s20, 1
      %p219 = por %p217, %p218
      %p220 = scmp.ne.s32.totalorder %s212, %s215
      %p221 = scmp.eq.s32.totalorder %s20, 0
      %p222 = por %p220, %p221
      %p223 = scmp.ne.s32.totalorder %s212, %s215
      %p224 = scmp.eq.s32.totalorder %s25, 1
      %p225 = por %p223, %p224
      %p226 = scmp.ne.s32.totalorder %s215, %s216
      %p227 = scmp.eq.s32.totalorder %s25, 0
      %p228 = por %p226, %p227
      %p229 = scmp.ne.s32.totalorder %s215, %s216
      %p230 = scmp.eq.s32.totalorder %s26, 1
      %p231 = por %p229, %p230
      %p233 = scmp.ne.s32.totalorder %s216, %s232
      %p234 = scmp.eq.s32.totalorder %s26, 0
      %p235 = por %p233, %p234
      %p236 = scmp.le.s32.totalorder 1, %s20
      %p237 = scmp.lt.s32.totalorder %s20, 3
      %p238 = pnand %p236, %p237
      %p239 = pneg %p238
      // Predicated region
      $region9: #{tpu_custom_call.1} parent=5 // pred_check
        _
      $region10: #{tpu_custom_call.1} parent=5 // pred_check_branch
        %241 = sbr.rel (%p238) target = $region12
      $region11: #{tpu_custom_call.1} parent=5 // pred_region
        %s242 = ssub.s32 %s20, 1
        // Predicated region
        $region13: #{tpu_custom_call.1} parent=11 // pred_check
          %p243 = pneg %p81
        $region14: #{tpu_custom_call.1} parent=11 // pred_check_branch
          %245 = sbr.rel (%p243) target = $region16
        $region15: #{tpu_custom_call.1} parent=11 // pred_region
          _
        $region16: #{tpu_custom_call.1} parent=11 // pred_fallthru
          _
        // Predicated region
        $region17: #{tpu_custom_call.1} parent=11 // pred_check
          %p246 = pneg %p102
        $region18: #{tpu_custom_call.1} parent=11 // pred_check_branch
          %248 = sbr.rel (%p246) target = $region20
        $region19: #{tpu_custom_call.1} parent=11 // pred_region
          _
        $region20: #{tpu_custom_call.1} parent=11 // pred_fallthru
          _
        // Predicated region
        $region21: #{tpu_custom_call.1} parent=11 // pred_check
          %p249 = pneg %p123
        $region22: #{tpu_custom_call.1} parent=11 // pred_check_branch
          %251 = sbr.rel (%p249) target = $region24
        $region23: #{tpu_custom_call.1} parent=11 // pred_region
          _
        $region24: #{tpu_custom_call.1} parent=11 // pred_fallthru
          _
        // Predicated region
        $region25: #{tpu_custom_call.1} parent=11 // pred_check
          %p252 = pneg %p144
        $region26: #{tpu_custom_call.1} parent=11 // pred_check_branch
          %254 = sbr.rel (%p252) target = $region28
        $region27: #{tpu_custom_call.1} parent=11 // pred_region
          _
        $region28: #{tpu_custom_call.1} parent=11 // pred_fallthru
          _
      $region12: #{tpu_custom_call.1} parent=5 // pred_fallthru
        _
      %p255 = scmp.lt.s32.totalorder %s20, 2
      // Predicated region
      $region29: #{tpu_custom_call.1} parent=5 // pred_check
        %p256 = pneg %p255
      $region30: #{tpu_custom_call.1} parent=5 // pred_check_branch
        %258 = sbr.rel (%p256) target = $region32
      $region31: #{tpu_custom_call.1} parent=5 // pred_region
        // Predicated region
        $region33: #{tpu_custom_call.1} parent=31 // pred_check
          %p259 = pneg %p54
        $region34: #{tpu_custom_call.1} parent=31 // pred_check_branch
          %261 = sbr.rel (%p259) target = $region36
        $region35: #{tpu_custom_call.1} parent=31 // pred_region
          %s262 = sand.u32 %s44, 1
          %s263 = scalar_lea.sflag [#allocation3], %s262
          %s264 = sand.u32 %s44, 1
          %s265 = smul.addr %s264, 8
          %s266 = scalar_lea.vmem [#allocation2], %s265
          %s267 = smul.u32 2, %s28
          %s269 = ssub.s32 128, 128
          %270 = vsyncadd %s263, %s269
          %s271 = smul.addr %s27, 2
          %s272 = sadd.s32 %s267, %s271
          %s273 = smul.addr %s272, 64
          %s274 = scalar_lea.hbm %s0, %s273
          %s276 = sshll.u32 %s266, 4
          %s277 = int_to_ptr.vmem [resolvable:$true] %s276
          %279 = dma.hbm_to_vmem [thread:$0]  %s274, 128, %s277, %s263
        $region36: #{tpu_custom_call.1} parent=31 // pred_fallthru
          _
      $region32: #{tpu_custom_call.1} parent=5 // pred_fallthru
        _
      %p280 = scmp.le.s32.totalorder 1, %s20
      %p281 = scmp.lt.s32.totalorder %s20, 3
      %p282 = pnand %p280, %p281
      %p283 = pneg %p282
      // Predicated region
      $region37: #{tpu_custom_call.1} parent=5 // pred_check
        _
      $region38: #{tpu_custom_call.1} parent=5 // pred_check_branch
        %285 = sbr.rel (%p282) target = $region40
      $region39: #{tpu_custom_call.1} parent=5 // pred_region
        %s286 = ssub.s32 %s20, 1
        %s287 = sand.u32 %s47, 1
        %s288 = scalar_lea.sflag [#allocation3], %s287
        %s289 = sand.u32 %s47, 1
        %s290 = smul.addr %s289, 8
        %s291 = scalar_lea.vmem [#allocation2], %s290
        // Predicated region
        $region41: #{tpu_custom_call.1} parent=39 // pred_check
          %p292 = pneg %p60
        $region42: #{tpu_custom_call.1} parent=39 // pred_check_branch
          %294 = sbr.rel (%p292) target = $region44
        $region43: #{tpu_custom_call.1} parent=39 // pred_region
          %295 = dma.done %s288, 128
        $region44: #{tpu_custom_call.1} parent=39 // pred_fallthru
          _
        %s296 = sand.u32 %s47, 1
        %s297 = scalar_lea.sflag [#allocation3], %s296
        %s298 = sand.u32 %s47, 1
        %s299 = smul.addr %s298, 8
        %s300 = scalar_lea.vmem [#allocation2], %s299
        %p301 = pneg %p60
        %p302 = pneg %p57
        %p303 = pneg %p81
        %p304 = pneg %p78
        %p305 = pneg %p102
        %p306 = pneg %p99
        %p307 = pneg %p123
        %p308 = pneg %p120
        %p309 = pneg %p144
        %p310 = pneg %p141
        %p311 = pneg %p172
        %p312 = pneg %p169
        %s313 = smul.u32 2, %s30
        %p314 = scmp.lt.s32.totalorder %s29, 1
        %s315 = scalar_select %p314, %s29, 1
        %p316 = scmp.lt.s32.totalorder %s313, 1
        %s317 = scalar_select %p316, %s313, 1
        %s318 = smul.addr %s315, 2
        %s319 = sadd.s32 %s317, %s318
        %s320 = smul.addr %s319, 4
        %s321 = scalar_lea.vmem %s5, %s320
        %p322 = pneg %p200
        %p323 = pneg %p197
        %s324 = smul.u32 2, %s30
        %p325 = scmp.lt.s32.totalorder %s29, 1
        %s326 = scalar_select %p325, %s29, 1
        %p327 = scmp.lt.s32.totalorder %s324, 1
        %s328 = scalar_select %p327, %s324, 1
        %s329 = smul.addr %s326, 2
        %s330 = sadd.s32 %s328, %s329
        %s331 = smul.addr %s330, 4
        %s332 = scalar_lea.vmem %s6, %s331
        %p333 = pneg %p228
        %p334 = pneg %p225
        %s335 = sand.u32 %s215, 1
        %s336 = scalar_lea.sflag [#allocation4], %s335
        %s337 = sand.u32 %s215, 1
        %s338 = smul.addr %s337, 2
        %s339 = scalar_lea.vmem [#allocation5], %s338
        %s340 = smul.u32 2, %s30
        %s341 = smul.u32 2, %s30
        %p342 = scmp.lt.s32.totalorder %s29, 1
        %s343 = scalar_select %p342, %s29, 1
        %p344 = scmp.lt.s32.totalorder %s341, 1
        %s345 = scalar_select %p344, %s341, 1
        %s346 = smul.addr %s343, 2
        %s347 = sadd.s32 %s345, %s346
        %s348 = smul.addr %s347, 4
        %s349 = scalar_lea.vmem %s5, %s348
        %s350 = smul.u32 2, %s30
        %s351 = smul.u32 2, %s30
        %p352 = scmp.lt.s32.totalorder %s29, 1
        %s353 = scalar_select %p352, %s29, 1
        %p354 = scmp.lt.s32.totalorder %s351, 1
        %s355 = scalar_select %p354, %s351, 1
        %s356 = smul.addr %s353, 2
        %s357 = sadd.s32 %s355, %s356
        %s358 = smul.addr %s357, 4
        %s359 = scalar_lea.vmem %s6, %s358
        %s360 = smul.u32 2, %s30
        %s361 = smul.u32 2, %s30
        %v362 = vld [vmem:[%s291] sm:$0xff]
        %v363 = vld [vmem:[%s1] sm:$0x7]
        %v364 = vld [vmem:[%s2] sm:$0x7]
        %366 = vset.pattern.permute.xlu0 0
        %367 = vperm.xlu0 %366, %v364
        %v368 = vpop.permute.xlu0 %367
        %v371 = vcombine.high %v362, %v362
        %vm372 = vcmask 31744
        %v374 = vsel %vm372, %v363, 0
        %vm376 = vcmask 1043456
        %v377 = vsel %vm376, %v362, 0
        %v379 = vsel %vm376, %v371, 0
        %381 = vmatprep.subr.mxu0 0.0
        %382 = vmatpush1.msra.mxu0 0.0
        %383 = vmatprep.subr.mxu0 0.0
        %384 = vmatpush1.msra.mxu0 0.0
        %385 = vmatprep.subr.mxu0 0.0
        %386 = vmatpush1.msra.mxu0 0.0
        %387 = vmatprep.subr.mxu0 0.0
        %388 = vmatpush1.msra.mxu0 0.0
        %389 = vmatprep.subr.mxu0 0.0
        %390 = vmatpush1.msra.mxu0 0.0
        %391 = vmatprep.subr.mxu0 0.0
        %392 = vmatpush1.msra.mxu0 0.0
        %393 = vmatprep.subr.mxu0 0.0
        %394 = vmatpush1.msra.mxu0 0.0
        %395 = vmatprep.subr.mxu0 0.0
        %396 = vmatpush1.msra.mxu0 0.0
        %397 = vmatprep.subr.mxu0 0.0
        %398 = vmatpush1.msra.mxu0 0.0
        %399 = vmatprep.subr.mxu0 0.0
        %400 = vmatpush1.msra.mxu0 0.0
        %401 = vmatprep.subr.mxu0 0.0
        %402 = vmatpush1.msra.mxu0 0.0
        %403 = vmatprep.subr.mxu0 0.0
        %404 = vmatpush1.msra.mxu0 0.0
        %405 = vmatprep.subr.mxu0 0.0
        %406 = vmatpush1.msra.mxu0 0.0
        %407 = vmatprep.subr.mxu0 0.0
        %408 = vmatpush1.msra.mxu0 0.0
        %409 = vmatprep.subr.mxu0 0.0
        %410 = vmatpush1.msra.mxu0 0.0
        %411 = vmatprep.subr.mxu0 %v379
        %412 = vmatpush1.msra.mxu0 %v377
        %413 = vmatprep.subr.mxu0 0.0
        %414 = vmatpush2.msra.mxu0 0.0
        %415 = vmatprep.subr.mxu0 0.0
        %416 = vmatpush2.msra.mxu0 0.0
        %417 = vmatprep.subr.mxu0 0.0
        %418 = vmatpush2.msra.mxu0 0.0
        %419 = vmatprep.subr.mxu0 0.0
        %420 = vmatpush2.msra.mxu0 0.0
        %421 = vmatprep.subr.mxu0 0.0
        %422 = vmatpush2.msra.mxu0 0.0
        %423 = vmatprep.subr.mxu0 0.0
        %424 = vmatpush2.msra.mxu0 0.0
        %425 = vmatprep.subr.mxu0 0.0
        %426 = vmatpush2.msra.mxu0 0.0
        %427 = vmatprep.subr.mxu0 0.0
        %428 = vmatpush2.msra.mxu0 0.0
        %429 = vmatprep.subr.mxu0 0.0
        %430 = vmatpush2.msra.mxu0 0.0
        %431 = vmatprep.subr.mxu0 0.0
        %432 = vmatpush2.msra.mxu0 0.0
        %433 = vmatprep.subr.mxu0 0.0
        %434 = vmatpush2.msra.mxu0 0.0
        %435 = vmatprep.subr.mxu0 0.0
        %436 = vmatpush2.msra.mxu0 0.0
        %437 = vmatprep.subr.mxu0 0.0
        %438 = vmatpush2.msra.mxu0 0.0
        %439 = vmatprep.subr.mxu0 0.0
        %440 = vmatpush2.msra.mxu0 0.0
        %441 = vmatprep.subr.mxu0 0.0
        %442 = vmatpush2.msra.mxu0 0.0
        %443 = vmatprep.subr.mxu0 0.0
        %444 = vmatpush2.msra.mxu0 0.0
        %445 = vmatprep.mubr.f32.mxu0 0.0
        %446 = vmatmul.mubr.f32.gmra.mxu0 %v374
        %v447 = vpop.f32.mrf.mxu0
        %v448 = vadd.f32 %v368, %v447
        %v449 = vpop.f32.mrf.mxu0
        %v450 = vadd.f32 %v368, %v449
        %451 = vdwg.mxu0
        %v454 = vcombine.low %v448, %v450
        %456 = vst [vmem:[%s349] sm:$0x77] %v454
        %v457 = vld [vmem:[%s3] sm:$0x7]
        %v458 = vld [vmem:[%s4] sm:$0x7]
        %460 = vset.pattern.permute.xlu0 0
        %461 = vperm.xlu0 %460, %v458
        %v462 = vpop.permute.xlu0 %461
        %v465 = vsel %vm372, %v457, 0
        %467 = vmatprep.subr.mxu0 0.0
        %468 = vmatpush1.msra.mxu0 0.0
        %469 = vmatprep.subr.mxu0 0.0
        %470 = vmatpush1.msra.mxu0 0.0
        %471 = vmatprep.subr.mxu0 0.0
        %472 = vmatpush1.msra.mxu0 0.0
        %473 = vmatprep.subr.mxu0 0.0
        %474 = vmatpush1.msra.mxu0 0.0
        %475 = vmatprep.subr.mxu0 0.0
        %476 = vmatpush1.msra.mxu0 0.0
        %477 = vmatprep.subr.mxu0 0.0
        %478 = vmatpush1.msra.mxu0 0.0
        %479 = vmatprep.subr.mxu0 0.0
        %480 = vmatpush1.msra.mxu0 0.0
        %481 = vmatprep.subr.mxu0 0.0
        %482 = vmatpush1.msra.mxu0 0.0
        %483 = vmatprep.subr.mxu0 0.0
        %484 = vmatpush1.msra.mxu0 0.0
        %485 = vmatprep.subr.mxu0 0.0
        %486 = vmatpush1.msra.mxu0 0.0
        %487 = vmatprep.subr.mxu0 0.0
        %488 = vmatpush1.msra.mxu0 0.0
        %489 = vmatprep.subr.mxu0 0.0
        %490 = vmatpush1.msra.mxu0 0.0
        %491 = vmatprep.subr.mxu0 0.0
        %492 = vmatpush1.msra.mxu0 0.0
        %493 = vmatprep.subr.mxu0 0.0
        %494 = vmatpush1.msra.mxu0 0.0
        %495 = vmatprep.subr.mxu0 0.0
        %496 = vmatpush1.msra.mxu0 0.0
        %497 = vmatprep.subr.mxu0 %v379
        %498 = vmatpush1.msra.mxu0 %v377
        %499 = vmatprep.subr.mxu0 0.0
        %500 = vmatpush2.msra.mxu0 0.0
        %501 = vmatprep.subr.mxu0 0.0
        %502 = vmatpush2.msra.mxu0 0.0
        %503 = vmatprep.subr.mxu0 0.0
        %504 = vmatpush2.msra.mxu0 0.0
        %505 = vmatprep.subr.mxu0 0.0
        %506 = vmatpush2.msra.mxu0 0.0
        %507 = vmatprep.subr.mxu0 0.0
        %508 = vmatpush2.msra.mxu0 0.0
        %509 = vmatprep.subr.mxu0 0.0
        %510 = vmatpush2.msra.mxu0 0.0
        %511 = vmatprep.subr.mxu0 0.0
        %512 = vmatpush2.msra.mxu0 0.0
        %513 = vmatprep.subr.mxu0 0.0
        %514 = vmatpush2.msra.mxu0 0.0
        %515 = vmatprep.subr.mxu0 0.0
        %516 = vmatpush2.msra.mxu0 0.0
        %517 = vmatprep.subr.mxu0 0.0
        %518 = vmatpush2.msra.mxu0 0.0
        %519 = vmatprep.subr.mxu0 0.0
        %520 = vmatpush2.msra.mxu0 0.0
        %521 = vmatprep.subr.mxu0 0.0
        %522 = vmatpush2.msra.mxu0 0.0
        %523 = vmatprep.subr.mxu0 0.0
        %524 = vmatpush2.msra.mxu0 0.0
        %525 = vmatprep.subr.mxu0 0.0
        %526 = vmatpush2.msra.mxu0 0.0
        %527 = vmatprep.subr.mxu0 0.0
        %528 = vmatpush2.msra.mxu0 0.0
        %529 = vmatprep.subr.mxu0 0.0
        %530 = vmatpush2.msra.mxu0 0.0
        %531 = vmatprep.mubr.f32.mxu0 0.0
        %532 = vmatmul.mubr.f32.gmra.mxu0 %v465
        %v533 = vpop.f32.mrf.mxu0
        %v534 = vadd.f32 %v462, %v533
        %v535 = vpop.f32.mrf.mxu0
        %v536 = vadd.f32 %v462, %v535
        %537 = vdwg.mxu0
        %v540 = vcombine.low %v534, %v536
        %542 = vst [vmem:[%s359] sm:$0x77] %v540
        %v543 = vrot.slane %v448, 1
        %v544 = vrot.slane %v450, 1
        %v547 = vmin.f32 %v448, %v543
        %v548 = vmin.f32 %v450, %v544
        %v549 = vmax.f32 %v448, %v543
        %v550 = vmax.f32 %v450, %v544
        %v551 = vrot.slane %v448, 2
        %v552 = vrot.slane %v450, 2
        %v555 = vmin.f32 %v549, %v551
        %v556 = vmin.f32 %v550, %v552
        %v557 = vmax.f32 %v547, %v555
        %v558 = vmax.f32 %v548, %v556
        %v559 = vmax.f32 %v549, %v551
        %v560 = vmax.f32 %v550, %v552
        %v561 = vsub.f32 %v559, %v557
        %v562 = vsub.f32 %v560, %v558
        %v565 = vcombine.low %v561, %v562
        %v567 = vunpack.c.l.s4 1966171168
        %v568 = vunpack.c.0.s8 %v567
        %v569 = vlaneseq
        %v570 = vshrl.u32 %v569, 7
        %v571 = vsub.s32 %v568, %v570
        %v572 = vrot.slane %v565, %v571
        %v574 = vunpack.c.l.s4 1966171168
        %v575 = vunpack.c.0.s8 %v574
        %v576 = vlaneseq
        %v577 = vshrl.u32 %v576, 7
        %v578 = vsub.s32 %v575, %v577
        %v579 = vrot.slane %v572, %v578
        %v581 = vlaneseq
        %vm582 = vcmp.ge.s32.totalorder %v581, 0
        %vm583 = vcmp.lt.s32.totalorder %v581, 256
        %vm584 = vmand %vm582, %vm583
        %585 = vst.msk [vmem:[%s339] sm:$0x3] %vm584, %v579
        %s586 = smul.u32 2, %s30
        %p587 = scmp.lt.s32.totalorder %s29, 1
        %s588 = scalar_select %p587, %s29, 1
        %p589 = scmp.lt.s32.totalorder %s586, 1
        %s590 = scalar_select %p589, %s586, 1
        %s591 = smul.addr %s588, 2
        %s592 = sadd.s32 %s590, %s591
        %s593 = smul.addr %s592, 4
        %s594 = scalar_lea.vmem %s5, %s593
        %s595 = smul.u32 2, %s30
        %p596 = scmp.lt.s32.totalorder %s29, 1
        %s597 = scalar_select %p596, %s29, 1
        %p598 = scmp.lt.s32.totalorder %s595, 1
        %s599 = scalar_select %p598, %s595, 1
        %s600 = smul.addr %s597, 2
        %s601 = sadd.s32 %s599, %s600
        %s602 = smul.addr %s601, 4
        %s603 = scalar_lea.vmem %s6, %s602
        %s604 = sand.u32 %s215, 1
        %s605 = scalar_lea.sflag [#allocation4], %s604
        %s606 = sand.u32 %s215, 1
        %s607 = smul.addr %s606, 2
        %s608 = scalar_lea.vmem [#allocation5], %s607
        // Predicated region
        $region45: #{tpu_custom_call.1} parent=39 // pred_check
          %p609 = pneg %p169
        $region46: #{tpu_custom_call.1} parent=39 // pred_check_branch
          %611 = sbr.rel (%p609) target = $region48
        $region47: #{tpu_custom_call.1} parent=39 // pred_region
          %s612 = smul.u32 2, %s30
        $region48: #{tpu_custom_call.1} parent=39 // pred_fallthru
          _
        // Predicated region
        $region49: #{tpu_custom_call.1} parent=39 // pred_check
          %p613 = pneg %p197
        $region50: #{tpu_custom_call.1} parent=39 // pred_check_branch
          %615 = sbr.rel (%p613) target = $region52
        $region51: #{tpu_custom_call.1} parent=39 // pred_region
          %s616 = smul.u32 2, %s30
        $region52: #{tpu_custom_call.1} parent=39 // pred_fallthru
          _
        // Predicated region
        $region53: #{tpu_custom_call.1} parent=39 // pred_check
          %p617 = pneg %p225
        $region54: #{tpu_custom_call.1} parent=39 // pred_check_branch
          %619 = sbr.rel (%p617) target = $region56
        $region55: #{tpu_custom_call.1} parent=39 // pred_region
          %s620 = smul.u32 2, %s30
          %s622 = ssub.s32 32, 32
          %623 = vsyncadd %s605, %s622
          %s624 = smul.addr %s29, 2
          %s625 = sadd.s32 %s620, %s624
          %s626 = smul.addr %s625, 16
          %s627 = scalar_lea.hbm %s7, %s626
          %s629 = sshll.u32 %s608, 4
          %s630 = int_to_ptr.vmem [resolvable:$true] %s629
          %632 = dma.vmem_to_hbm [thread:$0]  %s630, 32, %s627, %s605
        $region56: #{tpu_custom_call.1} parent=39 // pred_fallthru
          _
      $region40: #{tpu_custom_call.1} parent=5 // pred_fallthru
        _
      %p633 = scmp.le.s32.totalorder 2, %s20
      // Predicated region
      $region57: #{tpu_custom_call.1} parent=5 // pred_check
        %p634 = pneg %p633
      $region58: #{tpu_custom_call.1} parent=5 // pred_check_branch
        %636 = sbr.rel (%p634) target = $region60
      $region59: #{tpu_custom_call.1} parent=5 // pred_region
        %s637 = ssub.s32 %s20, 2
        // Predicated region
        $region61: #{tpu_custom_call.1} parent=59 // pred_check
          %p638 = pneg %p175
        $region62: #{tpu_custom_call.1} parent=59 // pred_check_branch
          %640 = sbr.rel (%p638) target = $region64
        $region63: #{tpu_custom_call.1} parent=59 // pred_region
          %s641 = smul.u32 2, %s32
          %p642 = scmp.lt.s32.totalorder %s31, 1
          %s643 = scalar_select %p642, %s31, 1
          %p644 = scmp.lt.s32.totalorder %s641, 1
          %s645 = scalar_select %p644, %s641, 1
          %s646 = smul.addr %s643, 2
          %s647 = sadd.s32 %s645, %s646
          %s648 = smul.addr %s647, 4
          %s649 = scalar_lea.vmem %s5, %s648
        $region64: #{tpu_custom_call.1} parent=59 // pred_fallthru
          _
        // Predicated region
        $region65: #{tpu_custom_call.1} parent=59 // pred_check
          %p650 = pneg %p203
        $region66: #{tpu_custom_call.1} parent=59 // pred_check_branch
          %652 = sbr.rel (%p650) target = $region68
        $region67: #{tpu_custom_call.1} parent=59 // pred_region
          %s653 = smul.u32 2, %s32
          %p654 = scmp.lt.s32.totalorder %s31, 1
          %s655 = scalar_select %p654, %s31, 1
          %p656 = scmp.lt.s32.totalorder %s653, 1
          %s657 = scalar_select %p656, %s653, 1
          %s658 = smul.addr %s655, 2
          %s659 = sadd.s32 %s657, %s658
          %s660 = smul.addr %s659, 4
          %s661 = scalar_lea.vmem %s6, %s660
        $region68: #{tpu_custom_call.1} parent=59 // pred_fallthru
          _
        // Predicated region
        $region69: #{tpu_custom_call.1} parent=59 // pred_check
          %p662 = pneg %p231
        $region70: #{tpu_custom_call.1} parent=59 // pred_check_branch
          %664 = sbr.rel (%p662) target = $region72
        $region71: #{tpu_custom_call.1} parent=59 // pred_region
          %s665 = sand.u32 %s216, 1
          %s666 = scalar_lea.sflag [#allocation4], %s665
          %s667 = sand.u32 %s216, 1
          %s668 = smul.addr %s667, 2
          %s669 = scalar_lea.vmem [#allocation5], %s668
          %670 = dma.done %s666, 32
        $region72: #{tpu_custom_call.1} parent=59 // pred_fallthru
          _
      $region60: #{tpu_custom_call.1} parent=5 // pred_fallthru
        _
    $region6: #{tpu_custom_call.1} parent=1 // loop_footer
      %s24 = sadd.s32 1, %s20
    $region7: #{tpu_custom_call.1} parent=1 // loop_footer_branch
      %19 = sbr.rel target = $region3
    $region8: #{tpu_custom_call.1} parent=1 // loop_exit
      _
    %671 = vsyncpa [#allocation3], 1
    %s672 = scalar_lea.sflag [#allocation3], 1
    %673 = vsyncpa %s672, 1
    %674 = vsyncpa [#allocation4], 1
    %s675 = scalar_lea.sflag [#allocation4], 1
    %676 = vsyncpa %s675, 1

</llo_original>
